<compile_context>
chip_gen: v7x
topology: tpu7x:2x2x1
jax: 0.10.0
libtpu: 0.0.40
codegen_flags: <defaults>
</compile_context>

<pallas_src>
import jax
import jax.numpy as jnp
from jax.experimental import pallas as pl
from jax.experimental.pallas import tpu as pltpu


def _round_up(x, m):
    return (x + m - 1) // m * m


def _base_model_kernel(fin_ref, xin_ref, ftgt_ref,
                       w1f_ref, w1x_ref, b1_ref, wft_ref, wht_ref, b2_ref,
                       out_ref):
    """One batch tile per grid step (all trailing dims flattened to 2-D).

    fin  : (BT, T_in*F)   encoder features, row-major [t, f]
    xin  : (BT, T_in)     encoder inputs (width-1 series)
    ftgt : (BT, T_out*F)  target-side features, row-major [t, f]
    w1f  : (F, H), w1x: (1, H), b1: (1, H)
    wft  : (2, F)  (row 0 -> mean path, row 1 -> pre-std path)
    wht  : (2, H)
    b2   : (2,)  in SMEM (scalar reads)
    out  : (BT, 2*T_out)  cols [0:T_out] -> means, cols [T_out:2*T_out] -> stds
    """
    bt = fin_ref.shape[0]
    f_in, h_dim = w1f_ref.shape
    t_in = xin_ref.shape[1]
    t_out = out_ref.shape[1] // 2

    fin = fin_ref[...]                          # (BT, T_in*F)
    xin = xin_ref[...]                          # (BT, T_in)
    w1f = w1f_ref[...]                          # (F, H)
    w1x = w1x_ref[...]                          # (1, H)
    b1 = b1_ref[...]                            # (1, H)

    # ---- Encoder: unrolled VPU broadcast-FMAs (K=4 is far too small for the MXU) ----
    ctx = jnp.zeros((bt, h_dim), jnp.float32)
    for t in range(t_in):                       # static unroll (t_in == 8)
        h_t = b1 + xin[:, t:t + 1] * w1x        # width-1 inputs path, (BT, H)
        for f in range(f_in):
            col = t * f_in + f
            h_t = h_t + fin[:, col:col + 1] * w1f[f:f + 1, :]
        ctx = ctx + jnp.maximum(h_t, 0.0)       # ReLU + temporal accumulation
    ctx = ctx * (1.0 / t_in)                    # temporal mean-pool context, (BT, H)

    # ---- Decoder: tiny-K paths on the VPU + lane reduce (XLU) ----
    wht = wht_ref[...]                          # (2, H)
    wft = wft_ref[...]                          # (2, F)
    ft = ftgt_ref[...]                          # (BT, T_out*F)

    mu_c = jnp.sum(ctx * wht[0:1, :], axis=1, keepdims=True)   # (BT, 1)
    sd_c = jnp.sum(ctx * wht[1:2, :], axis=1, keepdims=True)   # (BT, 1)

    mu_cols, sig_cols = [], []
    for t in range(t_out):                      # static unroll (t_out == 4)
        ft_t = ft[:, t * f_in:(t + 1) * f_in]                   # (BT, F)
        mu_t = jnp.sum(ft_t * wft[0:1, :], axis=1, keepdims=True) + mu_c + b2_ref[0]
        pre = jnp.sum(ft_t * wft[1:2, :], axis=1, keepdims=True) + sd_c + b2_ref[1]
        # Numerically stable softplus (exp/log1p use the EUP slot) + epsilon floor.
        sig_t = jnp.maximum(pre, 0.0) + jnp.log1p(jnp.exp(-jnp.abs(pre)))
        sig_t = jnp.maximum(sig_t, 1e-6)
        mu_cols.append(mu_t)
        sig_cols.append(sig_t)

    # Single full-tile store -> one writeback DMA per grid step.
    out_ref[...] = jnp.concatenate(mu_cols + sig_cols, axis=1).astype(out_ref.dtype)


def pallas_base_model(params, feats_in, inputs, feats_tgt, b_tile=None):
    """Synthetic level-1 base model: (feats_in, inputs, feats_tgt) -> (means, stds)."""
    feats_in = jnp.asarray(feats_in, jnp.float32)
    inputs = jnp.asarray(inputs, jnp.float32)
    feats_tgt = jnp.asarray(feats_tgt, jnp.float32)

    B, T_in, F_in = feats_in.shape
    _, T_out, F_tgt = feats_tgt.shape
    H = params["w1f"].shape[-1]

    enc_w = T_in * F_in
    x_w = T_in
    dec_w = T_out * F_tgt
    out_w = 2 * T_out

    # Metadata-only reshapes (contiguous arrays): flatten trailing dims so each
    # per-element stream pads to a single 128-lane row in VMEM instead of one
    # padded row per time step, and each DMA row is one contiguous run.
    fin2 = feats_in.reshape(B, enc_w)
    xin2 = inputs.reshape(B, x_w)
    ftg2 = feats_tgt.reshape(B, dec_w)

    if b_tile is None:
        # Double-buffered, (8,128)-padded f32 footprint per batch element
        # (3 inputs + 1 output, each lane-padded up to a multiple of 128).
        padded_lanes = sum(_round_up(w, 128) for w in (enc_w, x_w, dec_w, out_w))
        per_elem_bytes = 2 * 4 * padded_lanes
        vmem_budget = 32 * 1024 * 1024          # pipeline buffers; fits v7x 64 MiB VMEM
        cap = max(8, (vmem_budget // per_elem_bytes) // 8 * 8)
        if B <= 512:
            b_tile = B                          # one block; block dims == full array dims
        else:
            # >= 2 balanced steps so both v7x TensorCores get work; multiple of 8.
            b_tile = min(cap, _round_up(pl.cdiv(B, 2), 8))

    grid = (pl.cdiv(B, b_tile),)                # no jnp.pad: ragged tail block is masked

    out = pl.pallas_call(
        _base_model_kernel,
        out_shape=jax.ShapeDtypeStruct((B, out_w), jnp.float32),
        grid_spec=pltpu.PrefetchScalarGridSpec(
            num_scalar_prefetch=0,
            grid=grid,
            in_specs=[
                pl.BlockSpec((b_tile, enc_w), lambda b: (b, 0)),
                pl.BlockSpec((b_tile, x_w), lambda b: (b, 0)),
                pl.BlockSpec((b_tile, dec_w), lambda b: (b, 0)),
                # Weights: constant block index -> VMEM-resident across grid steps.
                pl.BlockSpec((F_in, H), lambda b: (0, 0)),
                pl.BlockSpec((1, H), lambda b: (0, 0)),
                pl.BlockSpec((1, H), lambda b: (0, 0)),
                pl.BlockSpec((2, F_tgt), lambda b: (0, 0)),
                pl.BlockSpec((2, H), lambda b: (0, 0)),
                # Tiny output bias as SMEM scalars.
                pl.BlockSpec(memory_space=pltpu.MemorySpace.SMEM),
            ],
            out_specs=pl.BlockSpec((b_tile, out_w), lambda b: (b, 0)),
        ),
        compiler_params=pltpu.CompilerParams(
            dimension_semantics=("parallel",),
            vmem_limit_bytes=48 * 1024 * 1024),
    )(fin2, xin2, ftg2,
      params["w1f"], params["w1x"], params["b1"],
      params["wf_t"], params["wh_t"], params["b2"])

    # TODO(synk): if downstream consumers accept the packed (B, 2*T_out) slab,
    # return it directly (and optionally pack 16 elements per 128-lane output row)
    # to skip this split pass; the module interface here requires (means, stds).
    means = out[:, :T_out].reshape(B, T_out, 1)
    stds = out[:, T_out:].reshape(B, T_out, 1)
    return means, stds


class NLL:
    """JAX mirror of models/inf_models.py::NLL — pure delegation to the level-1 model."""

    def __init__(self, base_models_dict, device=None):
        self.base_models_dict = base_models_dict
        self.device = device  # .to(device) is a no-op in JAX

    def forward(self, feats_in_dict, inputs_dict, feats_tgt_dict, norm_dict,
                targets_dict=None):
        return self.base_models_dict[1](
            feats_in_dict[1], inputs_dict[1], feats_tgt_dict[1])

    __call__ = forward


def make_params(key, f_in, f_tgt, hidden):
    k1, k2, k3, k4 = jax.random.split(key, 4)
    return {
        "w1f": jax.random.normal(k1, (f_in, hidden), jnp.float32) * 0.1,
        "w1x": jax.random.normal(k2, (1, hidden), jnp.float32) * 0.1,
        "b1": jnp.zeros((1, hidden), jnp.float32),
        "wf_t": jax.random.normal(k3, (2, f_tgt), jnp.float32) * 0.1,
        "wh_t": jax.random.normal(k4, (2, hidden), jnp.float32) * 0.1,
        "b2": jnp.zeros((2,), jnp.float32),
    }


def _ref_base_model(p, fi, x, ft):
    """Pure-JAX reference of the same synthetic base model."""
    h = jnp.maximum(fi @ p["w1f"] + x * p["w1x"] + p["b1"], 0.0)
    ctx = jnp.mean(h, axis=1)                                    # (B, H)
    dec = ft @ p["wf_t"].T + (ctx @ p["wh_t"].T)[:, None, :] + p["b2"]
    mu = dec[..., 0:1]
    sig = jnp.maximum(jax.nn.softplus(dec[..., 1:2]), 1e-6)
    return mu, sig


if __name__ == "__main__":
    B, T_IN, T_OUT, F_FEAT, HIDDEN = 2, 8, 4, 4, 32

    key = jax.random.PRNGKey(0)
    kp, kf, ki, kt = jax.random.split(key, 4)

    params = make_params(kp, F_FEAT, F_FEAT, HIDDEN)

    feats_in = jax.random.normal(kf, (B, T_IN, F_FEAT), jnp.float32)
    inputs = jax.random.normal(ki, (B, T_IN, 1), jnp.float32)
    feats_tgt = jax.random.normal(kt, (B, T_OUT, F_FEAT), jnp.float32)

    # Dict-of-levels interface, matching the PyTorch forward signature.
    base_models_dict = {1: lambda fi, x, ft: pallas_base_model(params, fi, x, ft)}
    model = NLL(base_models_dict, device=None)

    means, stds = model(
        feats_in_dict={1: feats_in},
        inputs_dict={1: inputs},
        feats_tgt_dict={1: feats_tgt},
        norm_dict={1: None},
    )
    jax.block_until_ready((means, stds))

    assert means.shape == (B, T_OUT, 1) and stds.shape == (B, T_OUT, 1)
    assert bool(jnp.all(stds > 0))

    ref_mu, ref_sig = _ref_base_model(params, feats_in, inputs, feats_tgt)
    assert bool(jnp.allclose(means, ref_mu, atol=1e-3, rtol=1e-3))
    assert bool(jnp.allclose(stds, ref_sig, atol=1e-3, rtol=1e-3))

    print("KERNEL_OK")
</pallas_src>

<mosaic_0001>
module attributes {stable_mosaic.version = 11 : i64} {
  func.func @_base_model_kernel(%arg0: i32, %arg1: memref<2x32xf32, #tpu.memory_space<vmem>>, %arg2: memref<2x8xf32, #tpu.memory_space<vmem>>, %arg3: memref<2x16xf32, #tpu.memory_space<vmem>>, %arg4: memref<4x32xf32, #tpu.memory_space<vmem>>, %arg5: memref<1x32xf32, #tpu.memory_space<vmem>>, %arg6: memref<1x32xf32, #tpu.memory_space<vmem>>, %arg7: memref<2x4xf32, #tpu.memory_space<vmem>>, %arg8: memref<2x32xf32, #tpu.memory_space<vmem>>, %arg9: memref<2xf32, #tpu.memory_space<smem>>, %arg10: memref<2x8xf32, #tpu.memory_space<vmem>>) attributes {dimension_semantics = [#tpu.dimension_semantics<parallel>], iteration_bounds = array<i64: 1>, scalar_prefetch = 0 : i64, scratch_operands = 0 : i64, tpu.core_type = #tpu.core_type<tc>, window_params = [{transform_indices = @transform_0, window_bounds = array<i64: 2, 32>}, {transform_indices = @transform_1, window_bounds = array<i64: 2, 8>}, {transform_indices = @transform_2, window_bounds = array<i64: 2, 16>}, {pipeline_mode = #tpu.pipeline_mode<synchronous>, transform_indices = @transform_3, window_bounds = array<i64: 4, 32>}, {pipeline_mode = #tpu.pipeline_mode<synchronous>, transform_indices = @transform_4, window_bounds = array<i64: 1, 32>}, {pipeline_mode = #tpu.pipeline_mode<synchronous>, transform_indices = @transform_5, window_bounds = array<i64: 1, 32>}, {pipeline_mode = #tpu.pipeline_mode<synchronous>, transform_indices = @transform_6, window_bounds = array<i64: 2, 4>}, {pipeline_mode = #tpu.pipeline_mode<synchronous>, transform_indices = @transform_7, window_bounds = array<i64: 2, 32>}, {transform_indices = @transform_8, window_bounds = array<i64: 2>}, {transform_indices = @transform_9, window_bounds = array<i64: 2, 8>}]} {
    %c0 = arith.constant 0 : index
    %c0_0 = arith.constant 0 : index
    %0 = vector.load %arg1[%c0, %c0_0] : memref<2x32xf32, #tpu.memory_space<vmem>>, vector<2x32xf32>
    %c0_1 = arith.constant 0 : index
    %c0_2 = arith.constant 0 : index
    %1 = vector.load %arg2[%c0_1, %c0_2] : memref<2x8xf32, #tpu.memory_space<vmem>>, vector<2x8xf32>
    %c0_3 = arith.constant 0 : index
    %c0_4 = arith.constant 0 : index
    %2 = vector.load %arg4[%c0_3, %c0_4] : memref<4x32xf32, #tpu.memory_space<vmem>>, vector<4x32xf32>
    %c0_5 = arith.constant 0 : index
    %c0_6 = arith.constant 0 : index
    %3 = vector.load %arg5[%c0_5, %c0_6] : memref<1x32xf32, #tpu.memory_space<vmem>>, vector<1x32xf32>
    %c0_7 = arith.constant 0 : index
    %c0_8 = arith.constant 0 : index
    %4 = vector.load %arg6[%c0_7, %c0_8] : memref<1x32xf32, #tpu.memory_space<vmem>>, vector<1x32xf32>
    %cst = arith.constant 0.000000e+00 : f32
    %5 = vector.broadcast %cst : f32 to vector<2x32xf32>
    %6 = vector.extract_strided_slice %1 {offsets = [0, 0], sizes = [2, 1], strides = [1, 1]} : vector<2x8xf32> to vector<2x1xf32>
    %7 = vector.broadcast %6 : vector<2x1xf32> to vector<2x32xf32>
    %8 = vector.broadcast %3 : vector<1x32xf32> to vector<2x32xf32>
    %9 = arith.mulf %7, %8 : vector<2x32xf32>
    %10 = vector.broadcast %4 : vector<1x32xf32> to vector<2x32xf32>
    %11 = arith.addf %10, %9 : vector<2x32xf32>
    %12 = vector.extract_strided_slice %0 {offsets = [0, 0], sizes = [2, 1], strides = [1, 1]} : vector<2x32xf32> to vector<2x1xf32>
    %13 = vector.extract_strided_slice %2 {offsets = [0, 0], sizes = [1, 32], strides = [1, 1]} : vector<4x32xf32> to vector<1x32xf32>
    %14 = vector.broadcast %12 : vector<2x1xf32> to vector<2x32xf32>
    %15 = vector.broadcast %13 : vector<1x32xf32> to vector<2x32xf32>
    %16 = arith.mulf %14, %15 : vector<2x32xf32>
    %17 = arith.addf %11, %16 : vector<2x32xf32>
    %18 = vector.extract_strided_slice %0 {offsets = [0, 1], sizes = [2, 1], strides = [1, 1]} : vector<2x32xf32> to vector<2x1xf32>
    %19 = vector.extract_strided_slice %2 {offsets = [1, 0], sizes = [1, 32], strides = [1, 1]} : vector<4x32xf32> to vector<1x32xf32>
    %20 = vector.broadcast %18 : vector<2x1xf32> to vector<2x32xf32>
    %21 = vector.broadcast %19 : vector<1x32xf32> to vector<2x32xf32>
    %22 = arith.mulf %20, %21 : vector<2x32xf32>
    %23 = arith.addf %17, %22 : vector<2x32xf32>
    %24 = vector.extract_strided_slice %0 {offsets = [0, 2], sizes = [2, 1], strides = [1, 1]} : vector<2x32xf32> to vector<2x1xf32>
    %25 = vector.extract_strided_slice %2 {offsets = [2, 0], sizes = [1, 32], strides = [1, 1]} : vector<4x32xf32> to vector<1x32xf32>
    %26 = vector.broadcast %24 : vector<2x1xf32> to vector<2x32xf32>
    %27 = vector.broadcast %25 : vector<1x32xf32> to vector<2x32xf32>
    %28 = arith.mulf %26, %27 : vector<2x32xf32>
    %29 = arith.addf %23, %28 : vector<2x32xf32>
    %30 = vector.extract_strided_slice %0 {offsets = [0, 3], sizes = [2, 1], strides = [1, 1]} : vector<2x32xf32> to vector<2x1xf32>
    %31 = vector.extract_strided_slice %2 {offsets = [3, 0], sizes = [1, 32], strides = [1, 1]} : vector<4x32xf32> to vector<1x32xf32>
    %32 = vector.broadcast %30 : vector<2x1xf32> to vector<2x32xf32>
    %33 = vector.broadcast %31 : vector<1x32xf32> to vector<2x32xf32>
    %34 = arith.mulf %32, %33 : vector<2x32xf32>
    %35 = arith.addf %29, %34 : vector<2x32xf32>
    %cst_9 = arith.constant 0.000000e+00 : f32
    %36 = vector.broadcast %cst_9 : f32 to vector<2x32xf32>
    %37 = arith.maximumf %35, %36 : vector<2x32xf32>
    %38 = arith.addf %5, %37 : vector<2x32xf32>
    %39 = vector.extract_strided_slice %1 {offsets = [0, 1], sizes = [2, 1], strides = [1, 1]} : vector<2x8xf32> to vector<2x1xf32>
    %40 = vector.broadcast %39 : vector<2x1xf32> to vector<2x32xf32>
    %41 = vector.broadcast %3 : vector<1x32xf32> to vector<2x32xf32>
    %42 = arith.mulf %40, %41 : vector<2x32xf32>
    %43 = vector.broadcast %4 : vector<1x32xf32> to vector<2x32xf32>
    %44 = arith.addf %43, %42 : vector<2x32xf32>
    %45 = vector.extract_strided_slice %0 {offsets = [0, 4], sizes = [2, 1], strides = [1, 1]} : vector<2x32xf32> to vector<2x1xf32>
    %46 = vector.extract_strided_slice %2 {offsets = [0, 0], sizes = [1, 32], strides = [1, 1]} : vector<4x32xf32> to vector<1x32xf32>
    %47 = vector.broadcast %45 : vector<2x1xf32> to vector<2x32xf32>
    %48 = vector.broadcast %46 : vector<1x32xf32> to vector<2x32xf32>
    %49 = arith.mulf %47, %48 : vector<2x32xf32>
    %50 = arith.addf %44, %49 : vector<2x32xf32>
    %51 = vector.extract_strided_slice %0 {offsets = [0, 5], sizes = [2, 1], strides = [1, 1]} : vector<2x32xf32> to vector<2x1xf32>
    %52 = vector.extract_strided_slice %2 {offsets = [1, 0], sizes = [1, 32], strides = [1, 1]} : vector<4x32xf32> to vector<1x32xf32>
    %53 = vector.broadcast %51 : vector<2x1xf32> to vector<2x32xf32>
    %54 = vector.broadcast %52 : vector<1x32xf32> to vector<2x32xf32>
    %55 = arith.mulf %53, %54 : vector<2x32xf32>
    %56 = arith.addf %50, %55 : vector<2x32xf32>
    %57 = vector.extract_strided_slice %0 {offsets = [0, 6], sizes = [2, 1], strides = [1, 1]} : vector<2x32xf32> to vector<2x1xf32>
    %58 = vector.extract_strided_slice %2 {offsets = [2, 0], sizes = [1, 32], strides = [1, 1]} : vector<4x32xf32> to vector<1x32xf32>
    %59 = vector.broadcast %57 : vector<2x1xf32> to vector<2x32xf32>
    %60 = vector.broadcast %58 : vector<1x32xf32> to vector<2x32xf32>
    %61 = arith.mulf %59, %60 : vector<2x32xf32>
    %62 = arith.addf %56, %61 : vector<2x32xf32>
    %63 = vector.extract_strided_slice %0 {offsets = [0, 7], sizes = [2, 1], strides = [1, 1]} : vector<2x32xf32> to vector<2x1xf32>
    %64 = vector.extract_strided_slice %2 {offsets = [3, 0], sizes = [1, 32], strides = [1, 1]} : vector<4x32xf32> to vector<1x32xf32>
    %65 = vector.broadcast %63 : vector<2x1xf32> to vector<2x32xf32>
    %66 = vector.broadcast %64 : vector<1x32xf32> to vector<2x32xf32>
    %67 = arith.mulf %65, %66 : vector<2x32xf32>
    %68 = arith.addf %62, %67 : vector<2x32xf32>
    %cst_10 = arith.constant 0.000000e+00 : f32
    %69 = vector.broadcast %cst_10 : f32 to vector<2x32xf32>
    %70 = arith.maximumf %68, %69 : vector<2x32xf32>
    %71 = arith.addf %38, %70 : vector<2x32xf32>
    %72 = vector.extract_strided_slice %1 {offsets = [0, 2], sizes = [2, 1], strides = [1, 1]} : vector<2x8xf32> to vector<2x1xf32>
    %73 = vector.broadcast %72 : vector<2x1xf32> to vector<2x32xf32>
    %74 = vector.broadcast %3 : vector<1x32xf32> to vector<2x32xf32>
    %75 = arith.mulf %73, %74 : vector<2x32xf32>
    %76 = vector.broadcast %4 : vector<1x32xf32> to vector<2x32xf32>
    %77 = arith.addf %76, %75 : vector<2x32xf32>
    %78 = vector.extract_strided_slice %0 {offsets = [0, 8], sizes = [2, 1], strides = [1, 1]} : vector<2x32xf32> to vector<2x1xf32>
    %79 = vector.extract_strided_slice %2 {offsets = [0, 0], sizes = [1, 32], strides = [1, 1]} : vector<4x32xf32> to vector<1x32xf32>
    %80 = vector.broadcast %78 : vector<2x1xf32> to vector<2x32xf32>
    %81 = vector.broadcast %79 : vector<1x32xf32> to vector<2x32xf32>
    %82 = arith.mulf %80, %81 : vector<2x32xf32>
    %83 = arith.addf %77, %82 : vector<2x32xf32>
    %84 = vector.extract_strided_slice %0 {offsets = [0, 9], sizes = [2, 1], strides = [1, 1]} : vector<2x32xf32> to vector<2x1xf32>
    %85 = vector.extract_strided_slice %2 {offsets = [1, 0], sizes = [1, 32], strides = [1, 1]} : vector<4x32xf32> to vector<1x32xf32>
    %86 = vector.broadcast %84 : vector<2x1xf32> to vector<2x32xf32>
    %87 = vector.broadcast %85 : vector<1x32xf32> to vector<2x32xf32>
    %88 = arith.mulf %86, %87 : vector<2x32xf32>
    %89 = arith.addf %83, %88 : vector<2x32xf32>
    %90 = vector.extract_strided_slice %0 {offsets = [0, 10], sizes = [2, 1], strides = [1, 1]} : vector<2x32xf32> to vector<2x1xf32>
    %91 = vector.extract_strided_slice %2 {offsets = [2, 0], sizes = [1, 32], strides = [1, 1]} : vector<4x32xf32> to vector<1x32xf32>
    %92 = vector.broadcast %90 : vector<2x1xf32> to vector<2x32xf32>
    %93 = vector.broadcast %91 : vector<1x32xf32> to vector<2x32xf32>
    %94 = arith.mulf %92, %93 : vector<2x32xf32>
    %95 = arith.addf %89, %94 : vector<2x32xf32>
    %96 = vector.extract_strided_slice %0 {offsets = [0, 11], sizes = [2, 1], strides = [1, 1]} : vector<2x32xf32> to vector<2x1xf32>
    %97 = vector.extract_strided_slice %2 {offsets = [3, 0], sizes = [1, 32], strides = [1, 1]} : vector<4x32xf32> to vector<1x32xf32>
    %98 = vector.broadcast %96 : vector<2x1xf32> to vector<2x32xf32>
    %99 = vector.broadcast %97 : vector<1x32xf32> to vector<2x32xf32>
    %100 = arith.mulf %98, %99 : vector<2x32xf32>
    %101 = arith.addf %95, %100 : vector<2x32xf32>
    %cst_11 = arith.constant 0.000000e+00 : f32
    %102 = vector.broadcast %cst_11 : f32 to vector<2x32xf32>
    %103 = arith.maximumf %101, %102 : vector<2x32xf32>
    %104 = arith.addf %71, %103 : vector<2x32xf32>
    %105 = vector.extract_strided_slice %1 {offsets = [0, 3], sizes = [2, 1], strides = [1, 1]} : vector<2x8xf32> to vector<2x1xf32>
    %106 = vector.broadcast %105 : vector<2x1xf32> to vector<2x32xf32>
    %107 = vector.broadcast %3 : vector<1x32xf32> to vector<2x32xf32>
    %108 = arith.mulf %106, %107 : vector<2x32xf32>
    %109 = vector.broadcast %4 : vector<1x32xf32> to vector<2x32xf32>
    %110 = arith.addf %109, %108 : vector<2x32xf32>
    %111 = vector.extract_strided_slice %0 {offsets = [0, 12], sizes = [2, 1], strides = [1, 1]} : vector<2x32xf32> to vector<2x1xf32>
    %112 = vector.extract_strided_slice %2 {offsets = [0, 0], sizes = [1, 32], strides = [1, 1]} : vector<4x32xf32> to vector<1x32xf32>
    %113 = vector.broadcast %111 : vector<2x1xf32> to vector<2x32xf32>
    %114 = vector.broadcast %112 : vector<1x32xf32> to vector<2x32xf32>
    %115 = arith.mulf %113, %114 : vector<2x32xf32>
    %116 = arith.addf %110, %115 : vector<2x32xf32>
    %117 = vector.extract_strided_slice %0 {offsets = [0, 13], sizes = [2, 1], strides = [1, 1]} : vector<2x32xf32> to vector<2x1xf32>
    %118 = vector.extract_strided_slice %2 {offsets = [1, 0], sizes = [1, 32], strides = [1, 1]} : vector<4x32xf32> to vector<1x32xf32>
    %119 = vector.broadcast %117 : vector<2x1xf32> to vector<2x32xf32>
    %120 = vector.broadcast %118 : vector<1x32xf32> to vector<2x32xf32>
    %121 = arith.mulf %119, %120 : vector<2x32xf32>
    %122 = arith.addf %116, %121 : vector<2x32xf32>
    %123 = vector.extract_strided_slice %0 {offsets = [0, 14], sizes = [2, 1], strides = [1, 1]} : vector<2x32xf32> to vector<2x1xf32>
    %124 = vector.extract_strided_slice %2 {offsets = [2, 0], sizes = [1, 32], strides = [1, 1]} : vector<4x32xf32> to vector<1x32xf32>
    %125 = vector.broadcast %123 : vector<2x1xf32> to vector<2x32xf32>
    %126 = vector.broadcast %124 : vector<1x32xf32> to vector<2x32xf32>
    %127 = arith.mulf %125, %126 : vector<2x32xf32>
    %128 = arith.addf %122, %127 : vector<2x32xf32>
    %129 = vector.extract_strided_slice %0 {offsets = [0, 15], sizes = [2, 1], strides = [1, 1]} : vector<2x32xf32> to vector<2x1xf32>
    %130 = vector.extract_strided_slice %2 {offsets = [3, 0], sizes = [1, 32], strides = [1, 1]} : vector<4x32xf32> to vector<1x32xf32>
    %131 = vector.broadcast %129 : vector<2x1xf32> to vector<2x32xf32>
    %132 = vector.broadcast %130 : vector<1x32xf32> to vector<2x32xf32>
    %133 = arith.mulf %131, %132 : vector<2x32xf32>
    %134 = arith.addf %128, %133 : vector<2x32xf32>
    %cst_12 = arith.constant 0.000000e+00 : f32
    %135 = vector.broadcast %cst_12 : f32 to vector<2x32xf32>
    %136 = arith.maximumf %134, %135 : vector<2x32xf32>
    %137 = arith.addf %104, %136 : vector<2x32xf32>
    %138 = vector.extract_strided_slice %1 {offsets = [0, 4], sizes = [2, 1], strides = [1, 1]} : vector<2x8xf32> to vector<2x1xf32>
    %139 = vector.broadcast %138 : vector<2x1xf32> to vector<2x32xf32>
    %140 = vector.broadcast %3 : vector<1x32xf32> to vector<2x32xf32>
    %141 = arith.mulf %139, %140 : vector<2x32xf32>
    %142 = vector.broadcast %4 : vector<1x32xf32> to vector<2x32xf32>
    %143 = arith.addf %142, %141 : vector<2x32xf32>
    %144 = vector.extract_strided_slice %0 {offsets = [0, 16], sizes = [2, 1], strides = [1, 1]} : vector<2x32xf32> to vector<2x1xf32>
    %145 = vector.extract_strided_slice %2 {offsets = [0, 0], sizes = [1, 32], strides = [1, 1]} : vector<4x32xf32> to vector<1x32xf32>
    %146 = vector.broadcast %144 : vector<2x1xf32> to vector<2x32xf32>
    %147 = vector.broadcast %145 : vector<1x32xf32> to vector<2x32xf32>
    %148 = arith.mulf %146, %147 : vector<2x32xf32>
    %149 = arith.addf %143, %148 : vector<2x32xf32>
    %150 = vector.extract_strided_slice %0 {offsets = [0, 17], sizes = [2, 1], strides = [1, 1]} : vector<2x32xf32> to vector<2x1xf32>
    %151 = vector.extract_strided_slice %2 {offsets = [1, 0], sizes = [1, 32], strides = [1, 1]} : vector<4x32xf32> to vector<1x32xf32>
    %152 = vector.broadcast %150 : vector<2x1xf32> to vector<2x32xf32>
    %153 = vector.broadcast %151 : vector<1x32xf32> to vector<2x32xf32>
    %154 = arith.mulf %152, %153 : vector<2x32xf32>
    %155 = arith.addf %149, %154 : vector<2x32xf32>
    %156 = vector.extract_strided_slice %0 {offsets = [0, 18], sizes = [2, 1], strides = [1, 1]} : vector<2x32xf32> to vector<2x1xf32>
    %157 = vector.extract_strided_slice %2 {offsets = [2, 0], sizes = [1, 32], strides = [1, 1]} : vector<4x32xf32> to vector<1x32xf32>
    %158 = vector.broadcast %156 : vector<2x1xf32> to vector<2x32xf32>
    %159 = vector.broadcast %157 : vector<1x32xf32> to vector<2x32xf32>
    %160 = arith.mulf %158, %159 : vector<2x32xf32>
    %161 = arith.addf %155, %160 : vector<2x32xf32>
    %162 = vector.extract_strided_slice %0 {offsets = [0, 19], sizes = [2, 1], strides = [1, 1]} : vector<2x32xf32> to vector<2x1xf32>
    %163 = vector.extract_strided_slice %2 {offsets = [3, 0], sizes = [1, 32], strides = [1, 1]} : vector<4x32xf32> to vector<1x32xf32>
    %164 = vector.broadcast %162 : vector<2x1xf32> to vector<2x32xf32>
    %165 = vector.broadcast %163 : vector<1x32xf32> to vector<2x32xf32>
    %166 = arith.mulf %164, %165 : vector<2x32xf32>
    %167 = arith.addf %161, %166 : vector<2x32xf32>
    %cst_13 = arith.constant 0.000000e+00 : f32
    %168 = vector.broadcast %cst_13 : f32 to vector<2x32xf32>
    %169 = arith.maximumf %167, %168 : vector<2x32xf32>
    %170 = arith.addf %137, %169 : vector<2x32xf32>
    %171 = vector.extract_strided_slice %1 {offsets = [0, 5], sizes = [2, 1], strides = [1, 1]} : vector<2x8xf32> to vector<2x1xf32>
    %172 = vector.broadcast %171 : vector<2x1xf32> to vector<2x32xf32>
    %173 = vector.broadcast %3 : vector<1x32xf32> to vector<2x32xf32>
    %174 = arith.mulf %172, %173 : vector<2x32xf32>
    %175 = vector.broadcast %4 : vector<1x32xf32> to vector<2x32xf32>
    %176 = arith.addf %175, %174 : vector<2x32xf32>
    %177 = vector.extract_strided_slice %0 {offsets = [0, 20], sizes = [2, 1], strides = [1, 1]} : vector<2x32xf32> to vector<2x1xf32>
    %178 = vector.extract_strided_slice %2 {offsets = [0, 0], sizes = [1, 32], strides = [1, 1]} : vector<4x32xf32> to vector<1x32xf32>
    %179 = vector.broadcast %177 : vector<2x1xf32> to vector<2x32xf32>
    %180 = vector.broadcast %178 : vector<1x32xf32> to vector<2x32xf32>
    %181 = arith.mulf %179, %180 : vector<2x32xf32>
    %182 = arith.addf %176, %181 : vector<2x32xf32>
    %183 = vector.extract_strided_slice %0 {offsets = [0, 21], sizes = [2, 1], strides = [1, 1]} : vector<2x32xf32> to vector<2x1xf32>
    %184 = vector.extract_strided_slice %2 {offsets = [1, 0], sizes = [1, 32], strides = [1, 1]} : vector<4x32xf32> to vector<1x32xf32>
    %185 = vector.broadcast %183 : vector<2x1xf32> to vector<2x32xf32>
    %186 = vector.broadcast %184 : vector<1x32xf32> to vector<2x32xf32>
    %187 = arith.mulf %185, %186 : vector<2x32xf32>
    %188 = arith.addf %182, %187 : vector<2x32xf32>
    %189 = vector.extract_strided_slice %0 {offsets = [0, 22], sizes = [2, 1], strides = [1, 1]} : vector<2x32xf32> to vector<2x1xf32>
    %190 = vector.extract_strided_slice %2 {offsets = [2, 0], sizes = [1, 32], strides = [1, 1]} : vector<4x32xf32> to vector<1x32xf32>
    %191 = vector.broadcast %189 : vector<2x1xf32> to vector<2x32xf32>
    %192 = vector.broadcast %190 : vector<1x32xf32> to vector<2x32xf32>
    %193 = arith.mulf %191, %192 : vector<2x32xf32>
    %194 = arith.addf %188, %193 : vector<2x32xf32>
    %195 = vector.extract_strided_slice %0 {offsets = [0, 23], sizes = [2, 1], strides = [1, 1]} : vector<2x32xf32> to vector<2x1xf32>
    %196 = vector.extract_strided_slice %2 {offsets = [3, 0], sizes = [1, 32], strides = [1, 1]} : vector<4x32xf32> to vector<1x32xf32>
    %197 = vector.broadcast %195 : vector<2x1xf32> to vector<2x32xf32>
    %198 = vector.broadcast %196 : vector<1x32xf32> to vector<2x32xf32>
    %199 = arith.mulf %197, %198 : vector<2x32xf32>
    %200 = arith.addf %194, %199 : vector<2x32xf32>
    %cst_14 = arith.constant 0.000000e+00 : f32
    %201 = vector.broadcast %cst_14 : f32 to vector<2x32xf32>
    %202 = arith.maximumf %200, %201 : vector<2x32xf32>
    %203 = arith.addf %170, %202 : vector<2x32xf32>
    %204 = vector.extract_strided_slice %1 {offsets = [0, 6], sizes = [2, 1], strides = [1, 1]} : vector<2x8xf32> to vector<2x1xf32>
    %205 = vector.broadcast %204 : vector<2x1xf32> to vector<2x32xf32>
    %206 = vector.broadcast %3 : vector<1x32xf32> to vector<2x32xf32>
    %207 = arith.mulf %205, %206 : vector<2x32xf32>
    %208 = vector.broadcast %4 : vector<1x32xf32> to vector<2x32xf32>
    %209 = arith.addf %208, %207 : vector<2x32xf32>
    %210 = vector.extract_strided_slice %0 {offsets = [0, 24], sizes = [2, 1], strides = [1, 1]} : vector<2x32xf32> to vector<2x1xf32>
    %211 = vector.extract_strided_slice %2 {offsets = [0, 0], sizes = [1, 32], strides = [1, 1]} : vector<4x32xf32> to vector<1x32xf32>
    %212 = vector.broadcast %210 : vector<2x1xf32> to vector<2x32xf32>
    %213 = vector.broadcast %211 : vector<1x32xf32> to vector<2x32xf32>
    %214 = arith.mulf %212, %213 : vector<2x32xf32>
    %215 = arith.addf %209, %214 : vector<2x32xf32>
    %216 = vector.extract_strided_slice %0 {offsets = [0, 25], sizes = [2, 1], strides = [1, 1]} : vector<2x32xf32> to vector<2x1xf32>
    %217 = vector.extract_strided_slice %2 {offsets = [1, 0], sizes = [1, 32], strides = [1, 1]} : vector<4x32xf32> to vector<1x32xf32>
    %218 = vector.broadcast %216 : vector<2x1xf32> to vector<2x32xf32>
    %219 = vector.broadcast %217 : vector<1x32xf32> to vector<2x32xf32>
    %220 = arith.mulf %218, %219 : vector<2x32xf32>
    %221 = arith.addf %215, %220 : vector<2x32xf32>
    %222 = vector.extract_strided_slice %0 {offsets = [0, 26], sizes = [2, 1], strides = [1, 1]} : vector<2x32xf32> to vector<2x1xf32>
    %223 = vector.extract_strided_slice %2 {offsets = [2, 0], sizes = [1, 32], strides = [1, 1]} : vector<4x32xf32> to vector<1x32xf32>
    %224 = vector.broadcast %222 : vector<2x1xf32> to vector<2x32xf32>
    %225 = vector.broadcast %223 : vector<1x32xf32> to vector<2x32xf32>
    %226 = arith.mulf %224, %225 : vector<2x32xf32>
    %227 = arith.addf %221, %226 : vector<2x32xf32>
    %228 = vector.extract_strided_slice %0 {offsets = [0, 27], sizes = [2, 1], strides = [1, 1]} : vector<2x32xf32> to vector<2x1xf32>
    %229 = vector.extract_strided_slice %2 {offsets = [3, 0], sizes = [1, 32], strides = [1, 1]} : vector<4x32xf32> to vector<1x32xf32>
    %230 = vector.broadcast %228 : vector<2x1xf32> to vector<2x32xf32>
    %231 = vector.broadcast %229 : vector<1x32xf32> to vector<2x32xf32>
    %232 = arith.mulf %230, %231 : vector<2x32xf32>
    %233 = arith.addf %227, %232 : vector<2x32xf32>
    %cst_15 = arith.constant 0.000000e+00 : f32
    %234 = vector.broadcast %cst_15 : f32 to vector<2x32xf32>
    %235 = arith.maximumf %233, %234 : vector<2x32xf32>
    %236 = arith.addf %203, %235 : vector<2x32xf32>
    %237 = vector.extract_strided_slice %1 {offsets = [0, 7], sizes = [2, 1], strides = [1, 1]} : vector<2x8xf32> to vector<2x1xf32>
    %238 = vector.broadcast %237 : vector<2x1xf32> to vector<2x32xf32>
    %239 = vector.broadcast %3 : vector<1x32xf32> to vector<2x32xf32>
    %240 = arith.mulf %238, %239 : vector<2x32xf32>
    %241 = vector.broadcast %4 : vector<1x32xf32> to vector<2x32xf32>
    %242 = arith.addf %241, %240 : vector<2x32xf32>
    %243 = vector.extract_strided_slice %0 {offsets = [0, 28], sizes = [2, 1], strides = [1, 1]} : vector<2x32xf32> to vector<2x1xf32>
    %244 = vector.extract_strided_slice %2 {offsets = [0, 0], sizes = [1, 32], strides = [1, 1]} : vector<4x32xf32> to vector<1x32xf32>
    %245 = vector.broadcast %243 : vector<2x1xf32> to vector<2x32xf32>
    %246 = vector.broadcast %244 : vector<1x32xf32> to vector<2x32xf32>
    %247 = arith.mulf %245, %246 : vector<2x32xf32>
    %248 = arith.addf %242, %247 : vector<2x32xf32>
    %249 = vector.extract_strided_slice %0 {offsets = [0, 29], sizes = [2, 1], strides = [1, 1]} : vector<2x32xf32> to vector<2x1xf32>
    %250 = vector.extract_strided_slice %2 {offsets = [1, 0], sizes = [1, 32], strides = [1, 1]} : vector<4x32xf32> to vector<1x32xf32>
    %251 = vector.broadcast %249 : vector<2x1xf32> to vector<2x32xf32>
    %252 = vector.broadcast %250 : vector<1x32xf32> to vector<2x32xf32>
    %253 = arith.mulf %251, %252 : vector<2x32xf32>
    %254 = arith.addf %248, %253 : vector<2x32xf32>
    %255 = vector.extract_strided_slice %0 {offsets = [0, 30], sizes = [2, 1], strides = [1, 1]} : vector<2x32xf32> to vector<2x1xf32>
    %256 = vector.extract_strided_slice %2 {offsets = [2, 0], sizes = [1, 32], strides = [1, 1]} : vector<4x32xf32> to vector<1x32xf32>
    %257 = vector.broadcast %255 : vector<2x1xf32> to vector<2x32xf32>
    %258 = vector.broadcast %256 : vector<1x32xf32> to vector<2x32xf32>
    %259 = arith.mulf %257, %258 : vector<2x32xf32>
    %260 = arith.addf %254, %259 : vector<2x32xf32>
    %261 = vector.extract_strided_slice %0 {offsets = [0, 31], sizes = [2, 1], strides = [1, 1]} : vector<2x32xf32> to vector<2x1xf32>
    %262 = vector.extract_strided_slice %2 {offsets = [3, 0], sizes = [1, 32], strides = [1, 1]} : vector<4x32xf32> to vector<1x32xf32>
    %263 = vector.broadcast %261 : vector<2x1xf32> to vector<2x32xf32>
    %264 = vector.broadcast %262 : vector<1x32xf32> to vector<2x32xf32>
    %265 = arith.mulf %263, %264 : vector<2x32xf32>
    %266 = arith.addf %260, %265 : vector<2x32xf32>
    %cst_16 = arith.constant 0.000000e+00 : f32
    %267 = vector.broadcast %cst_16 : f32 to vector<2x32xf32>
    %268 = arith.maximumf %266, %267 : vector<2x32xf32>
    %269 = arith.addf %236, %268 : vector<2x32xf32>
    %cst_17 = arith.constant 1.250000e-01 : f32
    %270 = vector.broadcast %cst_17 : f32 to vector<2x32xf32>
    %271 = arith.mulf %269, %270 : vector<2x32xf32>
    %c0_18 = arith.constant 0 : index
    %c0_19 = arith.constant 0 : index
    %272 = vector.load %arg8[%c0_18, %c0_19] : memref<2x32xf32, #tpu.memory_space<vmem>>, vector<2x32xf32>
    %c0_20 = arith.constant 0 : index
    %c0_21 = arith.constant 0 : index
    %273 = vector.load %arg7[%c0_20, %c0_21] : memref<2x4xf32, #tpu.memory_space<vmem>>, vector<2x4xf32>
    %c0_22 = arith.constant 0 : index
    %c0_23 = arith.constant 0 : index
    %274 = vector.load %arg3[%c0_22, %c0_23] : memref<2x16xf32, #tpu.memory_space<vmem>>, vector<2x16xf32>
    %275 = vector.extract_strided_slice %272 {offsets = [0, 0], sizes = [1, 32], strides = [1, 1]} : vector<2x32xf32> to vector<1x32xf32>
    %276 = vector.broadcast %275 : vector<1x32xf32> to vector<2x32xf32>
    %277 = arith.mulf %271, %276 : vector<2x32xf32>
    %cst_24 = arith.constant dense<0.000000e+00> : vector<2xf32>
    %278 = vector.multi_reduction <add>, %277, %cst_24 [1] : vector<2x32xf32> to vector<2xf32>
    %279 = vector.shape_cast %278 : vector<2xf32> to vector<2x1xf32>
    %280 = vector.extract_strided_slice %272 {offsets = [1, 0], sizes = [1, 32], strides = [1, 1]} : vector<2x32xf32> to vector<1x32xf32>
    %281 = vector.broadcast %280 : vector<1x32xf32> to vector<2x32xf32>
    %282 = arith.mulf %271, %281 : vector<2x32xf32>
    %cst_25 = arith.constant dense<0.000000e+00> : vector<2xf32>
    %283 = vector.multi_reduction <add>, %282, %cst_25 [1] : vector<2x32xf32> to vector<2xf32>
    %284 = vector.shape_cast %283 : vector<2xf32> to vector<2x1xf32>
    %285 = vector.extract_strided_slice %274 {offsets = [0, 0], sizes = [2, 4], strides = [1, 1]} : vector<2x16xf32> to vector<2x4xf32>
    %286 = vector.extract_strided_slice %273 {offsets = [0, 0], sizes = [1, 4], strides = [1, 1]} : vector<2x4xf32> to vector<1x4xf32>
    %287 = vector.broadcast %286 : vector<1x4xf32> to vector<2x4xf32>
    %288 = arith.mulf %285, %287 : vector<2x4xf32>
    %cst_26 = arith.constant dense<0.000000e+00> : vector<2xf32>
    %289 = vector.multi_reduction <add>, %288, %cst_26 [1] : vector<2x4xf32> to vector<2xf32>
    %290 = vector.shape_cast %289 : vector<2xf32> to vector<2x1xf32>
    %291 = arith.addf %290, %279 : vector<2x1xf32>
    %c0_27 = arith.constant 0 : index
    %292 = memref.load %arg9[%c0_27] : memref<2xf32, #tpu.memory_space<smem>>
    %293 = vector.broadcast %292 : f32 to vector<2x1xf32>
    %294 = arith.addf %291, %293 : vector<2x1xf32>
    %295 = vector.extract_strided_slice %273 {offsets = [1, 0], sizes = [1, 4], strides = [1, 1]} : vector<2x4xf32> to vector<1x4xf32>
    %296 = vector.broadcast %295 : vector<1x4xf32> to vector<2x4xf32>
    %297 = arith.mulf %285, %296 : vector<2x4xf32>
    %cst_28 = arith.constant dense<0.000000e+00> : vector<2xf32>
    %298 = vector.multi_reduction <add>, %297, %cst_28 [1] : vector<2x4xf32> to vector<2xf32>
    %299 = vector.shape_cast %298 : vector<2xf32> to vector<2x1xf32>
    %300 = arith.addf %299, %284 : vector<2x1xf32>
    %c1 = arith.constant 1 : index
    %301 = memref.load %arg9[%c1] : memref<2xf32, #tpu.memory_space<smem>>
    %302 = vector.broadcast %301 : f32 to vector<2x1xf32>
    %303 = arith.addf %300, %302 : vector<2x1xf32>
    %cst_29 = arith.constant 0.000000e+00 : f32
    %304 = vector.broadcast %cst_29 : f32 to vector<2x1xf32>
    %305 = arith.maximumf %303, %304 : vector<2x1xf32>
    %306 = math.absf %303 : vector<2x1xf32>
    %cst_30 = arith.constant 0.000000e+00 : f32
    %307 = vector.broadcast %cst_30 : f32 to vector<2x1xf32>
    %308 = arith.subf %307, %306 : vector<2x1xf32>
    %309 = math.exp %308 : vector<2x1xf32>
    %310 = math.log1p %309 : vector<2x1xf32>
    %311 = arith.addf %305, %310 : vector<2x1xf32>
    %cst_31 = arith.constant 9.99999997E-7 : f32
    %312 = vector.broadcast %cst_31 : f32 to vector<2x1xf32>
    %313 = arith.maximumf %311, %312 : vector<2x1xf32>
    %314 = vector.extract_strided_slice %274 {offsets = [0, 4], sizes = [2, 4], strides = [1, 1]} : vector<2x16xf32> to vector<2x4xf32>
    %315 = vector.extract_strided_slice %273 {offsets = [0, 0], sizes = [1, 4], strides = [1, 1]} : vector<2x4xf32> to vector<1x4xf32>
    %316 = vector.broadcast %315 : vector<1x4xf32> to vector<2x4xf32>
    %317 = arith.mulf %314, %316 : vector<2x4xf32>
    %cst_32 = arith.constant dense<0.000000e+00> : vector<2xf32>
    %318 = vector.multi_reduction <add>, %317, %cst_32 [1] : vector<2x4xf32> to vector<2xf32>
    %319 = vector.shape_cast %318 : vector<2xf32> to vector<2x1xf32>
    %320 = arith.addf %319, %279 : vector<2x1xf32>
    %c0_33 = arith.constant 0 : index
    %321 = memref.load %arg9[%c0_33] : memref<2xf32, #tpu.memory_space<smem>>
    %322 = vector.broadcast %321 : f32 to vector<2x1xf32>
    %323 = arith.addf %320, %322 : vector<2x1xf32>
    %324 = vector.extract_strided_slice %273 {offsets = [1, 0], sizes = [1, 4], strides = [1, 1]} : vector<2x4xf32> to vector<1x4xf32>
    %325 = vector.broadcast %324 : vector<1x4xf32> to vector<2x4xf32>
    %326 = arith.mulf %314, %325 : vector<2x4xf32>
    %cst_34 = arith.constant dense<0.000000e+00> : vector<2xf32>
    %327 = vector.multi_reduction <add>, %326, %cst_34 [1] : vector<2x4xf32> to vector<2xf32>
    %328 = vector.shape_cast %327 : vector<2xf32> to vector<2x1xf32>
    %329 = arith.addf %328, %284 : vector<2x1xf32>
    %c1_35 = arith.constant 1 : index
    %330 = memref.load %arg9[%c1_35] : memref<2xf32, #tpu.memory_space<smem>>
    %331 = vector.broadcast %330 : f32 to vector<2x1xf32>
    %332 = arith.addf %329, %331 : vector<2x1xf32>
    %cst_36 = arith.constant 0.000000e+00 : f32
    %333 = vector.broadcast %cst_36 : f32 to vector<2x1xf32>
    %334 = arith.maximumf %332, %333 : vector<2x1xf32>
    %335 = math.absf %332 : vector<2x1xf32>
    %cst_37 = arith.constant 0.000000e+00 : f32
    %336 = vector.broadcast %cst_37 : f32 to vector<2x1xf32>
    %337 = arith.subf %336, %335 : vector<2x1xf32>
    %338 = math.exp %337 : vector<2x1xf32>
    %339 = math.log1p %338 : vector<2x1xf32>
    %340 = arith.addf %334, %339 : vector<2x1xf32>
    %cst_38 = arith.constant 9.99999997E-7 : f32
    %341 = vector.broadcast %cst_38 : f32 to vector<2x1xf32>
    %342 = arith.maximumf %340, %341 : vector<2x1xf32>
    %343 = vector.extract_strided_slice %274 {offsets = [0, 8], sizes = [2, 4], strides = [1, 1]} : vector<2x16xf32> to vector<2x4xf32>
    %344 = vector.extract_strided_slice %273 {offsets = [0, 0], sizes = [1, 4], strides = [1, 1]} : vector<2x4xf32> to vector<1x4xf32>
    %345 = vector.broadcast %344 : vector<1x4xf32> to vector<2x4xf32>
    %346 = arith.mulf %343, %345 : vector<2x4xf32>
    %cst_39 = arith.constant dense<0.000000e+00> : vector<2xf32>
    %347 = vector.multi_reduction <add>, %346, %cst_39 [1] : vector<2x4xf32> to vector<2xf32>
    %348 = vector.shape_cast %347 : vector<2xf32> to vector<2x1xf32>
    %349 = arith.addf %348, %279 : vector<2x1xf32>
    %c0_40 = arith.constant 0 : index
    %350 = memref.load %arg9[%c0_40] : memref<2xf32, #tpu.memory_space<smem>>
    %351 = vector.broadcast %350 : f32 to vector<2x1xf32>
    %352 = arith.addf %349, %351 : vector<2x1xf32>
    %353 = vector.extract_strided_slice %273 {offsets = [1, 0], sizes = [1, 4], strides = [1, 1]} : vector<2x4xf32> to vector<1x4xf32>
    %354 = vector.broadcast %353 : vector<1x4xf32> to vector<2x4xf32>
    %355 = arith.mulf %343, %354 : vector<2x4xf32>
    %cst_41 = arith.constant dense<0.000000e+00> : vector<2xf32>
    %356 = vector.multi_reduction <add>, %355, %cst_41 [1] : vector<2x4xf32> to vector<2xf32>
    %357 = vector.shape_cast %356 : vector<2xf32> to vector<2x1xf32>
    %358 = arith.addf %357, %284 : vector<2x1xf32>
    %c1_42 = arith.constant 1 : index
    %359 = memref.load %arg9[%c1_42] : memref<2xf32, #tpu.memory_space<smem>>
    %360 = vector.broadcast %359 : f32 to vector<2x1xf32>
    %361 = arith.addf %358, %360 : vector<2x1xf32>
    %cst_43 = arith.constant 0.000000e+00 : f32
    %362 = vector.broadcast %cst_43 : f32 to vector<2x1xf32>
    %363 = arith.maximumf %361, %362 : vector<2x1xf32>
    %364 = math.absf %361 : vector<2x1xf32>
    %cst_44 = arith.constant 0.000000e+00 : f32
    %365 = vector.broadcast %cst_44 : f32 to vector<2x1xf32>
    %366 = arith.subf %365, %364 : vector<2x1xf32>
    %367 = math.exp %366 : vector<2x1xf32>
    %368 = math.log1p %367 : vector<2x1xf32>
    %369 = arith.addf %363, %368 : vector<2x1xf32>
    %cst_45 = arith.constant 9.99999997E-7 : f32
    %370 = vector.broadcast %cst_45 : f32 to vector<2x1xf32>
    %371 = arith.maximumf %369, %370 : vector<2x1xf32>
    %372 = vector.extract_strided_slice %274 {offsets = [0, 12], sizes = [2, 4], strides = [1, 1]} : vector<2x16xf32> to vector<2x4xf32>
    %373 = vector.extract_strided_slice %273 {offsets = [0, 0], sizes = [1, 4], strides = [1, 1]} : vector<2x4xf32> to vector<1x4xf32>
    %374 = vector.broadcast %373 : vector<1x4xf32> to vector<2x4xf32>
    %375 = arith.mulf %372, %374 : vector<2x4xf32>
    %cst_46 = arith.constant dense<0.000000e+00> : vector<2xf32>
    %376 = vector.multi_reduction <add>, %375, %cst_46 [1] : vector<2x4xf32> to vector<2xf32>
    %377 = vector.shape_cast %376 : vector<2xf32> to vector<2x1xf32>
    %378 = arith.addf %377, %279 : vector<2x1xf32>
    %c0_47 = arith.constant 0 : index
    %379 = memref.load %arg9[%c0_47] : memref<2xf32, #tpu.memory_space<smem>>
    %380 = vector.broadcast %379 : f32 to vector<2x1xf32>
    %381 = arith.addf %378, %380 : vector<2x1xf32>
    %382 = vector.extract_strided_slice %273 {offsets = [1, 0], sizes = [1, 4], strides = [1, 1]} : vector<2x4xf32> to vector<1x4xf32>
    %383 = vector.broadcast %382 : vector<1x4xf32> to vector<2x4xf32>
    %384 = arith.mulf %372, %383 : vector<2x4xf32>
    %cst_48 = arith.constant dense<0.000000e+00> : vector<2xf32>
    %385 = vector.multi_reduction <add>, %384, %cst_48 [1] : vector<2x4xf32> to vector<2xf32>
    %386 = vector.shape_cast %385 : vector<2xf32> to vector<2x1xf32>
    %387 = arith.addf %386, %284 : vector<2x1xf32>
    %c1_49 = arith.constant 1 : index
    %388 = memref.load %arg9[%c1_49] : memref<2xf32, #tpu.memory_space<smem>>
    %389 = vector.broadcast %388 : f32 to vector<2x1xf32>
    %390 = arith.addf %387, %389 : vector<2x1xf32>
    %cst_50 = arith.constant 0.000000e+00 : f32
    %391 = vector.broadcast %cst_50 : f32 to vector<2x1xf32>
    %392 = arith.maximumf %390, %391 : vector<2x1xf32>
    %393 = math.absf %390 : vector<2x1xf32>
    %cst_51 = arith.constant 0.000000e+00 : f32
    %394 = vector.broadcast %cst_51 : f32 to vector<2x1xf32>
    %395 = arith.subf %394, %393 : vector<2x1xf32>
    %396 = math.exp %395 : vector<2x1xf32>
    %397 = math.log1p %396 : vector<2x1xf32>
    %398 = arith.addf %392, %397 : vector<2x1xf32>
    %cst_52 = arith.constant 9.99999997E-7 : f32
    %399 = vector.broadcast %cst_52 : f32 to vector<2x1xf32>
    %400 = arith.maximumf %398, %399 : vector<2x1xf32>
    %401 = tpu.concatenate %294, %323, %352, %381, %313, %342, %371, %400 in 1 : vector<2x1xf32>, vector<2x1xf32>, vector<2x1xf32>, vector<2x1xf32>, vector<2x1xf32>, vector<2x1xf32>, vector<2x1xf32>, vector<2x1xf32> -> vector<2x8xf32>
    %c0_53 = arith.constant 0 : index
    %c0_54 = arith.constant 0 : index
    %402 = vector.load %arg10[%c0_53, %c0_54] : memref<2x8xf32, #tpu.memory_space<vmem>>, vector<2x8xf32>
    tpu.vector_store %arg10[%c0_53, %c0_54], %401 {strides = array<i32>} : memref<2x8xf32, #tpu.memory_space<vmem>>, vector<2x8xf32>,
    return
  }
  func.func @transform_0(%arg0: i32) -> (i32, i32) {
    %c0_i32 = arith.constant 0 : i32
    %c0_i32_0 = arith.constant 0 : i32
    return %arg0, %c0_i32 : i32, i32
  }
  func.func @transform_1(%arg0: i32) -> (i32, i32) {
    %c0_i32 = arith.constant 0 : i32
    %c0_i32_0 = arith.constant 0 : i32
    return %arg0, %c0_i32 : i32, i32
  }
  func.func @transform_2(%arg0: i32) -> (i32, i32) {
    %c0_i32 = arith.constant 0 : i32
    %c0_i32_0 = arith.constant 0 : i32
    return %arg0, %c0_i32 : i32, i32
  }
  func.func @transform_3(%arg0: i32) -> (i32, i32) {
    %c0_i32 = arith.constant 0 : i32
    %c0_i32_0 = arith.constant 0 : i32
    %c0_i32_1 = arith.constant 0 : i32
    return %c0_i32, %c0_i32_0 : i32, i32
  }
  func.func @transform_4(%arg0: i32) -> (i32, i32) {
    %c0_i32 = arith.constant 0 : i32
    %c0_i32_0 = arith.constant 0 : i32
    %c0_i32_1 = arith.constant 0 : i32
    return %c0_i32, %c0_i32_0 : i32, i32
  }
  func.func @transform_5(%arg0: i32) -> (i32, i32) {
    %c0_i32 = arith.constant 0 : i32
    %c0_i32_0 = arith.constant 0 : i32
    %c0_i32_1 = arith.constant 0 : i32
    return %c0_i32, %c0_i32_0 : i32, i32
  }
  func.func @transform_6(%arg0: i32) -> (i32, i32) {
    %c0_i32 = arith.constant 0 : i32
    %c0_i32_0 = arith.constant 0 : i32
    %c0_i32_1 = arith.constant 0 : i32
    return %c0_i32, %c0_i32_0 : i32, i32
  }
  func.func @transform_7(%arg0: i32) -> (i32, i32) {
    %c0_i32 = arith.constant 0 : i32
    %c0_i32_0 = arith.constant 0 : i32
    %c0_i32_1 = arith.constant 0 : i32
    return %c0_i32, %c0_i32_0 : i32, i32
  }
  func.func @transform_8(%arg0: i32) -> i32 {
    %c0_i32 = arith.constant 0 : i32
    %c0_i32_0 = arith.constant 0 : i32
    return %c0_i32 : i32
  }
  func.func @transform_9(%arg0: i32) -> (i32, i32) {
    %c0_i32 = arith.constant 0 : i32
    %c0_i32_0 = arith.constant 0 : i32
    return %arg0, %c0_i32 : i32, i32
  }
}

</mosaic_0001>

<llo_original>
// kernel: tpu_custom_call.1
$region0: #{tpu_custom_call.1}
  #allocation0 [shape = 'u32[]', space=smem, size = 0x4, offset = 0x4, fixed_abs, tag = 'smem constant byte address 0x4 - core index']
  #allocation1 [shape = 'u32[144,128]{1,0:T(1,128)}', space=vmem, size = 0x12000, scoped, tag = 'internal scratch']
  %s0 = inlined_call_operand.hbm [shape: f32[2,32], index: 0, kind: input, shape index: {}]
  %s1 = inlined_call_operand.vmem [shape: f32[2,8], index: 1, kind: input, shape index: {}]
  %s2 = inlined_call_operand.hbm [shape: f32[2,16], index: 2, kind: input, shape index: {}]
  %s3 = inlined_call_operand.vmem [shape: f32[4,32], index: 3, kind: input, shape index: {}]
  %s4 = inlined_call_operand.vmem [shape: f32[1,32], index: 4, kind: input, shape index: {}]
  %s5 = inlined_call_operand.vmem [shape: f32[1,32], index: 5, kind: input, shape index: {}]
  %s6 = inlined_call_operand.vmem [shape: f32[2,4], index: 6, kind: input, shape index: {}]
  %s7 = inlined_call_operand.vmem [shape: f32[2,32], index: 7, kind: input, shape index: {}]
  %s8 = inlined_call_operand.vmem [shape: f32[2], index: 8, kind: input, shape index: {}]
  %s9 = inlined_call_operand.hbm [shape: f32[2,8], index: 9, kind: output, shape index: {}]
  %s10 = sld [smem:[#allocation0]]
  $region58: #{tpu_custom_call.1} parent=0
    _
  %s12 = ssub.s32 1, %s10
  %s13 = scalar_select 0, %s12, %s10
  $region1: #{tpu_custom_call.1} parent=0
    #allocation2 [shape = 'u8[1024]{0}', space=vmem, size = 0x400, scoped, tag = 'input window, operand 0, single buffered']
    #allocation3 [shape = 's32[1]{0}', space=sflag, size = 0x4, scoped, tag = 'scoped memory for tpu_custom_call.1']
    #allocation4 [shape = 's32[1]{0}', space=sflag, size = 0x4, scoped, tag = 'scoped memory for tpu_custom_call.1']
    #allocation5 [shape = 's32[1]{0}', space=sflag, size = 0x4, scoped, tag = 'scoped memory for tpu_custom_call.1']
    #allocation6 [shape = 'u8[1024]{0}', space=vmem, size = 0x400, scoped, tag = 'input window, operand 2, single buffered']
    #allocation7 [shape = 's32[1]{0}', space=sflag, size = 0x4, scoped, tag = 'scoped memory for tpu_custom_call.1']
    #allocation8 [shape = 'u8[512]{0}', space=smem, size = 0x200, scoped, tag = 'input window, operand 8, single buffered']
    #allocation9 [shape = 'u8[1024]{0}', space=vmem, size = 0x400, scoped, tag = 'output window, operand 0, single buffered']
    %14 = vsyncpa [#allocation3], 0
    %15 = vsyncpa [#allocation7], 0
    %16 = vsyncpa [#allocation5], 0
    %17 = vsyncpa [#allocation4], 0
    // Predicated region
    $region2: #{tpu_custom_call.1} parent=1 // pred_check
      _
    $region3: #{tpu_custom_call.1} parent=1 // pred_check_branch
      %19 = sbr.rel (0) target = $region5
    $region4: #{tpu_custom_call.1} parent=1 // pred_region
      %s21 = ssub.s32 32, 32
      %22 = vsyncadd [#allocation3], %s21
      %s24 = sshll.u32 [#allocation2], 4
      %s25 = int_to_ptr.vmem [resolvable:$true] %s24
      %27 = dma.hbm_to_vmem [thread:$0]  %s0, 32, %s25, [#allocation3]
    $region5: #{tpu_custom_call.1} parent=1 // pred_fallthru
      _
    // Predicated region
    $region6: #{tpu_custom_call.1} parent=1 // pred_check
      _
    $region7: #{tpu_custom_call.1} parent=1 // pred_check_branch
      %29 = sbr.rel (0) target = $region9
    $region8: #{tpu_custom_call.1} parent=1 // pred_region
      _
    $region9: #{tpu_custom_call.1} parent=1 // pred_fallthru
      _
    // Predicated region
    $region10: #{tpu_custom_call.1} parent=1 // pred_check
      _
    $region11: #{tpu_custom_call.1} parent=1 // pred_check_branch
      %31 = sbr.rel (0) target = $region13
    $region12: #{tpu_custom_call.1} parent=1 // pred_region
      %s33 = ssub.s32 32, 32
      %34 = vsyncadd [#allocation7], %s33
      %s36 = sshll.u32 [#allocation6], 4
      %s37 = int_to_ptr.vmem [resolvable:$true] %s36
      %39 = dma.hbm_to_vmem [thread:$0]  %s2, 32, %s37, [#allocation7]
    $region13: #{tpu_custom_call.1} parent=1 // pred_fallthru
      _
    // Predicated region
    $region14: #{tpu_custom_call.1} parent=1 // pred_check
      _
    $region15: #{tpu_custom_call.1} parent=1 // pred_check_branch
      %41 = sbr.rel (0) target = $region17
    $region16: #{tpu_custom_call.1} parent=1 // pred_region
      _
    $region17: #{tpu_custom_call.1} parent=1 // pred_fallthru
      _
    // Predicated region
    $region18: #{tpu_custom_call.1} parent=1 // pred_check
      _
    $region19: #{tpu_custom_call.1} parent=1 // pred_check_branch
      %43 = sbr.rel (0) target = $region21
    $region20: #{tpu_custom_call.1} parent=1 // pred_region
      _
    $region21: #{tpu_custom_call.1} parent=1 // pred_fallthru
      _
    // Predicated region
    $region22: #{tpu_custom_call.1} parent=1 // pred_check
      _
    $region23: #{tpu_custom_call.1} parent=1 // pred_check_branch
      %45 = sbr.rel (0) target = $region25
    $region24: #{tpu_custom_call.1} parent=1 // pred_region
      _
    $region25: #{tpu_custom_call.1} parent=1 // pred_fallthru
      _
    // Predicated region
    $region26: #{tpu_custom_call.1} parent=1 // pred_check
      _
    $region27: #{tpu_custom_call.1} parent=1 // pred_check_branch
      %47 = sbr.rel (0) target = $region29
    $region28: #{tpu_custom_call.1} parent=1 // pred_region
      _
    $region29: #{tpu_custom_call.1} parent=1 // pred_fallthru
      _
    // Predicated region
    $region30: #{tpu_custom_call.1} parent=1 // pred_check
      _
    $region31: #{tpu_custom_call.1} parent=1 // pred_check_branch
      %49 = sbr.rel (0) target = $region33
    $region32: #{tpu_custom_call.1} parent=1 // pred_region
      _
    $region33: #{tpu_custom_call.1} parent=1 // pred_fallthru
      _
    // Predicated region
    $region34: #{tpu_custom_call.1} parent=1 // pred_check
      _
    $region35: #{tpu_custom_call.1} parent=1 // pred_check_branch
      %51 = sbr.rel (0) target = $region37
    $region36: #{tpu_custom_call.1} parent=1 // pred_region
      %s53 = ssub.s32 16, 16
      %54 = vsyncadd [#allocation5], %s53
      %s56 = sshll.u32 %s8, 4
      %s57 = int_to_ptr.vmem [resolvable:$true] %s56
      %59 = dma.vmem_to_smem %s57, 16, [#allocation8], [#allocation5]
    $region37: #{tpu_custom_call.1} parent=1 // pred_fallthru
      _
    // Predicated region
    $region38: #{tpu_custom_call.1} parent=1 // pred_check
      _
    $region39: #{tpu_custom_call.1} parent=1 // pred_check_branch
      %61 = sbr.rel (0) target = $region41
    $region40: #{tpu_custom_call.1} parent=1 // pred_region
      %62 = dma.done [#allocation3], 32
    $region41: #{tpu_custom_call.1} parent=1 // pred_fallthru
      _
    // Predicated region
    $region42: #{tpu_custom_call.1} parent=1 // pred_check
      _
    $region43: #{tpu_custom_call.1} parent=1 // pred_check_branch
      %64 = sbr.rel (0) target = $region45
    $region44: #{tpu_custom_call.1} parent=1 // pred_region
      %65 = dma.done [#allocation7], 32
    $region45: #{tpu_custom_call.1} parent=1 // pred_fallthru
      _
    // Predicated region
    $region46: #{tpu_custom_call.1} parent=1 // pred_check
      _
    $region47: #{tpu_custom_call.1} parent=1 // pred_check_branch
      %67 = sbr.rel (0) target = $region49
    $region48: #{tpu_custom_call.1} parent=1 // pred_region
      %68 = dma.done [#allocation5], 16
    $region49: #{tpu_custom_call.1} parent=1 // pred_fallthru
      _
    %69 = sfence
    %v70 = vld [vmem:[#allocation2] sm:$0x3]
    %v71 = vld [vmem:[%s1] sm:$0x3]
    %v72 = vld [vmem:[%s3] sm:$0xf]
    %v73 = vld [vmem:[%s4] sm:$0x1]
    %v74 = vld [vmem:[%s5] sm:$0x1]
    %76 = vset.pattern.permute.xlu0 0
    %77 = vperm.xlu0 %76, %v71
    %v78 = vpop.permute.xlu0 %77
    %v81 = vlaneseq
    %v82 = vshrl.u32 %v81, 7
    %v83 = vsub.s32 0, %v82
    %v84 = vrot.slane %v73, %v83
    %v86 = vmul.f32 %v78, %v84
    %v88 = vlaneseq
    %v89 = vshrl.u32 %v88, 7
    %v90 = vsub.s32 0, %v89
    %v91 = vrot.slane %v74, %v90
    %v93 = vadd.f32 %v91, %v86
    %95 = vset.pattern.permute.xlu0 0
    %96 = vperm.xlu0 %95, %v70
    %v97 = vpop.permute.xlu0 %96
    %v99 = vlaneseq
    %v100 = vshrl.u32 %v99, 7
    %v101 = vsub.s32 0, %v100
    %v102 = vrot.slane %v72, %v101
    %v103 = vmul.f32 %v97, %v102
    %v104 = vadd.f32 %v93, %v103
    %105 = vset.pattern.permute.xlu0 1
    %106 = vperm.xlu0 %105, %v70
    %v107 = vpop.permute.xlu0 %106
    %v109 = vlaneseq
    %v110 = vshrl.u32 %v109, 7
    %v111 = vsub.s32 1, %v110
    %v112 = vrot.slane %v72, %v111
    %v113 = vmul.f32 %v107, %v112
    %v114 = vadd.f32 %v104, %v113
    %115 = vset.pattern.permute.xlu0 2
    %116 = vperm.xlu0 %115, %v70
    %v117 = vpop.permute.xlu0 %116
    %v119 = vlaneseq
    %v120 = vshrl.u32 %v119, 7
    %v121 = vsub.s32 2, %v120
    %v122 = vrot.slane %v72, %v121
    %v123 = vmul.f32 %v117, %v122
    %v124 = vadd.f32 %v114, %v123
    %125 = vset.pattern.permute.xlu0 3
    %126 = vperm.xlu0 %125, %v70
    %v127 = vpop.permute.xlu0 %126
    %v129 = vlaneseq
    %v130 = vshrl.u32 %v129, 7
    %v131 = vsub.s32 3, %v130
    %v132 = vrot.slane %v72, %v131
    %v133 = vmul.f32 %v127, %v132
    %v134 = vadd.f32 %v124, %v133
    %v135 = vmax.f32 %v134, 0.0
    %v136 = vadd.f32 %v135, 0.0
    %137 = vset.pattern.permute.xlu0 1
    %138 = vperm.xlu0 %137, %v71
    %v139 = vpop.permute.xlu0 %138
    %v141 = vmul.f32 %v139, %v84
    %v142 = vadd.f32 %v91, %v141
    %143 = vset.pattern.permute.xlu0 4
    %144 = vperm.xlu0 %143, %v70
    %v145 = vpop.permute.xlu0 %144
    %v147 = vmul.f32 %v145, %v102
    %v148 = vadd.f32 %v142, %v147
    %149 = vset.pattern.permute.xlu0 5
    %150 = vperm.xlu0 %149, %v70
    %v151 = vpop.permute.xlu0 %150
    %v153 = vmul.f32 %v151, %v112
    %v154 = vadd.f32 %v148, %v153
    %155 = vset.pattern.permute.xlu0 6
    %156 = vperm.xlu0 %155, %v70
    %v157 = vpop.permute.xlu0 %156
    %v159 = vmul.f32 %v157, %v122
    %v160 = vadd.f32 %v154, %v159
    %161 = vset.pattern.permute.xlu0 7
    %162 = vperm.xlu0 %161, %v70
    %v163 = vpop.permute.xlu0 %162
    %v165 = vmul.f32 %v163, %v132
    %v166 = vadd.f32 %v160, %v165
    %v167 = vmax.f32 %v166, 0.0
    %v168 = vadd.f32 %v136, %v167
    %169 = vset.pattern.permute.xlu0 2
    %170 = vperm.xlu0 %169, %v71
    %v171 = vpop.permute.xlu0 %170
    %v173 = vmul.f32 %v171, %v84
    %v174 = vadd.f32 %v91, %v173
    %175 = vset.pattern.permute.xlu0 8
    %176 = vperm.xlu0 %175, %v70
    %v177 = vpop.permute.xlu0 %176
    %v179 = vmul.f32 %v177, %v102
    %v180 = vadd.f32 %v174, %v179
    %181 = vset.pattern.permute.xlu0 9
    %182 = vperm.xlu0 %181, %v70
    %v183 = vpop.permute.xlu0 %182
    %v185 = vmul.f32 %v183, %v112
    %v186 = vadd.f32 %v180, %v185
    %187 = vset.pattern.permute.xlu0 10
    %188 = vperm.xlu0 %187, %v70
    %v189 = vpop.permute.xlu0 %188
    %v191 = vmul.f32 %v189, %v122
    %v192 = vadd.f32 %v186, %v191
    %193 = vset.pattern.permute.xlu0 11
    %194 = vperm.xlu0 %193, %v70
    %v195 = vpop.permute.xlu0 %194
    %v197 = vmul.f32 %v195, %v132
    %v198 = vadd.f32 %v192, %v197
    %v199 = vmax.f32 %v198, 0.0
    %v200 = vadd.f32 %v168, %v199
    %201 = vset.pattern.permute.xlu0 3
    %202 = vperm.xlu0 %201, %v71
    %v203 = vpop.permute.xlu0 %202
    %v205 = vmul.f32 %v203, %v84
    %v206 = vadd.f32 %v91, %v205
    %207 = vset.pattern.permute.xlu0 12
    %208 = vperm.xlu0 %207, %v70
    %v209 = vpop.permute.xlu0 %208
    %v211 = vmul.f32 %v209, %v102
    %v212 = vadd.f32 %v206, %v211
    %213 = vset.pattern.permute.xlu0 13
    %214 = vperm.xlu0 %213, %v70
    %v215 = vpop.permute.xlu0 %214
    %v217 = vmul.f32 %v215, %v112
    %v218 = vadd.f32 %v212, %v217
    %219 = vset.pattern.permute.xlu0 14
    %220 = vperm.xlu0 %219, %v70
    %v221 = vpop.permute.xlu0 %220
    %v223 = vmul.f32 %v221, %v122
    %v224 = vadd.f32 %v218, %v223
    %225 = vset.pattern.permute.xlu0 15
    %226 = vperm.xlu0 %225, %v70
    %v227 = vpop.permute.xlu0 %226
    %v229 = vmul.f32 %v227, %v132
    %v230 = vadd.f32 %v224, %v229
    %v231 = vmax.f32 %v230, 0.0
    %v232 = vadd.f32 %v200, %v231
    %233 = vset.pattern.permute.xlu0 4
    %234 = vperm.xlu0 %233, %v71
    %v235 = vpop.permute.xlu0 %234
    %v237 = vmul.f32 %v235, %v84
    %v238 = vadd.f32 %v91, %v237
    %239 = vset.pattern.permute.xlu0 16
    %240 = vperm.xlu0 %239, %v70
    %v241 = vpop.permute.xlu0 %240
    %v243 = vmul.f32 %v241, %v102
    %v244 = vadd.f32 %v238, %v243
    %245 = vset.pattern.permute.xlu0 17
    %246 = vperm.xlu0 %245, %v70
    %v247 = vpop.permute.xlu0 %246
    %v249 = vmul.f32 %v247, %v112
    %v250 = vadd.f32 %v244, %v249
    %251 = vset.pattern.permute.xlu0 18
    %252 = vperm.xlu0 %251, %v70
    %v253 = vpop.permute.xlu0 %252
    %v255 = vmul.f32 %v253, %v122
    %v256 = vadd.f32 %v250, %v255
    %257 = vset.pattern.permute.xlu0 19
    %258 = vperm.xlu0 %257, %v70
    %v259 = vpop.permute.xlu0 %258
    %v261 = vmul.f32 %v259, %v132
    %v262 = vadd.f32 %v256, %v261
    %v263 = vmax.f32 %v262, 0.0
    %v264 = vadd.f32 %v232, %v263
    %265 = vset.pattern.permute.xlu0 5
    %266 = vperm.xlu0 %265, %v71
    %v267 = vpop.permute.xlu0 %266
    %v269 = vmul.f32 %v267, %v84
    %v270 = vadd.f32 %v91, %v269
    %271 = vset.pattern.permute.xlu0 20
    %272 = vperm.xlu0 %271, %v70
    %v273 = vpop.permute.xlu0 %272
    %v275 = vmul.f32 %v273, %v102
    %v276 = vadd.f32 %v270, %v275
    %277 = vset.pattern.permute.xlu0 21
    %278 = vperm.xlu0 %277, %v70
    %v279 = vpop.permute.xlu0 %278
    %v281 = vmul.f32 %v279, %v112
    %v282 = vadd.f32 %v276, %v281
    %283 = vset.pattern.permute.xlu0 22
    %284 = vperm.xlu0 %283, %v70
    %v285 = vpop.permute.xlu0 %284
    %v287 = vmul.f32 %v285, %v122
    %v288 = vadd.f32 %v282, %v287
    %289 = vset.pattern.permute.xlu0 23
    %290 = vperm.xlu0 %289, %v70
    %v291 = vpop.permute.xlu0 %290
    %v293 = vmul.f32 %v291, %v132
    %v294 = vadd.f32 %v288, %v293
    %v295 = vmax.f32 %v294, 0.0
    %v296 = vadd.f32 %v264, %v295
    %297 = vset.pattern.permute.xlu0 6
    %298 = vperm.xlu0 %297, %v71
    %v299 = vpop.permute.xlu0 %298
    %v301 = vmul.f32 %v299, %v84
    %v302 = vadd.f32 %v91, %v301
    %303 = vset.pattern.permute.xlu0 24
    %304 = vperm.xlu0 %303, %v70
    %v305 = vpop.permute.xlu0 %304
    %v307 = vmul.f32 %v305, %v102
    %v308 = vadd.f32 %v302, %v307
    %309 = vset.pattern.permute.xlu0 25
    %310 = vperm.xlu0 %309, %v70
    %v311 = vpop.permute.xlu0 %310
    %v313 = vmul.f32 %v311, %v112
    %v314 = vadd.f32 %v308, %v313
    %315 = vset.pattern.permute.xlu0 26
    %316 = vperm.xlu0 %315, %v70
    %v317 = vpop.permute.xlu0 %316
    %v319 = vmul.f32 %v317, %v122
    %v320 = vadd.f32 %v314, %v319
    %321 = vset.pattern.permute.xlu0 27
    %322 = vperm.xlu0 %321, %v70
    %v323 = vpop.permute.xlu0 %322
    %v325 = vmul.f32 %v323, %v132
    %v326 = vadd.f32 %v320, %v325
    %v327 = vmax.f32 %v326, 0.0
    %v328 = vadd.f32 %v296, %v327
    %329 = vset.pattern.permute.xlu0 7
    %330 = vperm.xlu0 %329, %v71
    %v331 = vpop.permute.xlu0 %330
    %v333 = vmul.f32 %v331, %v84
    %v334 = vadd.f32 %v91, %v333
    %335 = vset.pattern.permute.xlu0 28
    %336 = vperm.xlu0 %335, %v70
    %v337 = vpop.permute.xlu0 %336
    %v339 = vmul.f32 %v337, %v102
    %v340 = vadd.f32 %v334, %v339
    %341 = vset.pattern.permute.xlu0 29
    %342 = vperm.xlu0 %341, %v70
    %v343 = vpop.permute.xlu0 %342
    %v345 = vmul.f32 %v343, %v112
    %v346 = vadd.f32 %v340, %v345
    %347 = vset.pattern.permute.xlu0 30
    %348 = vperm.xlu0 %347, %v70
    %v349 = vpop.permute.xlu0 %348
    %v351 = vmul.f32 %v349, %v122
    %v352 = vadd.f32 %v346, %v351
    %353 = vset.pattern.permute.xlu0 31
    %354 = vperm.xlu0 %353, %v70
    %v355 = vpop.permute.xlu0 %354
    %v357 = vmul.f32 %v355, %v132
    %v358 = vadd.f32 %v352, %v357
    %v359 = vmax.f32 %v358, 0.0
    %v360 = vadd.f32 %v328, %v359
    %v361 = vmul.f32 %v360, 0.125
    %v362 = vld [vmem:[%s7] sm:$0x3]
    %v363 = vld [vmem:[%s6] sm:$0x3]
    %v364 = vld [vmem:[#allocation6] sm:$0x3]
    %v365 = vlaneseq
    %v366 = vshrl.u32 %v365, 7
    %v367 = vsub.s32 0, %v366
    %v368 = vrot.slane %v362, %v367
    %v369 = vmul.f32 %v361, %v368
    %vm370 = vcmask 254976
    %v371 = vsel %vm370, %v369, 0.0
    %372 = vadd.xlane.f32.xlu0 %v371
    %v373 = vpop.xlane.xlu0 %372
    %v374 = vlaneseq
    %v375 = vshrl.u32 %v374, 7
    %v376 = vsub.s32 1, %v375
    %v377 = vrot.slane %v362, %v376
    %v378 = vmul.f32 %v361, %v377
    %v379 = vsel %vm370, %v378, 0.0
    %380 = vadd.xlane.f32.xlu0 %v379
    %v381 = vpop.xlane.xlu0 %380
    %v382 = vlaneseq
    %v383 = vshrl.u32 %v382, 7
    %v384 = vsub.s32 0, %v383
    %v385 = vrot.slane %v363, %v384
    %v386 = vmul.f32 %v364, %v385
    %vm387 = vcmask 25600
    %v388 = vsel %vm387, %v386, 0.0
    %389 = vadd.xlane.f32.xlu0 %v388
    %v390 = vpop.xlane.xlu0 %389
    %v391 = vadd.f32 %v390, %v373
    %s392 = sld [smem:[#allocation8]]
    %v393 = vstv %s392
    %v394 = vadd.f32 %v391, %v393
    %v395 = vlaneseq
    %v396 = vshrl.u32 %v395, 7
    %v397 = vsub.s32 1, %v396
    %v398 = vrot.slane %v363, %v397
    %v399 = vmul.f32 %v364, %v398
    %v400 = vsel %vm387, %v399, 0.0
    %401 = vadd.xlane.f32.xlu0 %v400
    %v402 = vpop.xlane.xlu0 %401
    %v403 = vadd.f32 %v402, %v381
    %s404 = sld [smem:[#allocation8 + $0x1]]
    %v405 = vstv %s404
    %v406 = vadd.f32 %v403, %v405
    %v407 = vmax.f32 %v406, 0.0
    %v408 = vand.u32 2147483647, %v406
    %v409 = vsub.f32 0.0, %v408
    %v410 = vmul.f32 %v409, 1.442695
    %v411 = vpow.pop %v410
    %v412 = vadd.f32 %v411, 1.0
    %v413 = vlog2.pop %v412
    %v414 = vmul.f32 %v413, 0.6931472
    %v415 = vmul.f32 -0.5, %v411
    %v416 = vadd.f32 %v415, 1.0
    %v417 = vmul.f32 %v416, %v411
    %v418 = vand.u32 2147483647, %v411
    %vm419 = vcmp.lt.f32.partialorder %v418, 0.0004427343
    %v420 = vsel %vm419, %v417, %v414
    %v421 = vadd.f32 %v407, %v420
    %v422 = vmax.f32 %v421, 1e-06
    %424 = vrot.lane.b32.xlu0 %v385, 4
    %v425 = vpop.permute.xlu0 %424
    %v427 = vmul.f32 %v364, %v425
    %429 = vrot.lane.b32.xlu0 %v427, 124
    %v430 = vpop.permute.xlu0 %429
    %v432 = vsel %vm387, %v430, 0.0
    %433 = vadd.xlane.f32.xlu0 %v432
    %v434 = vpop.xlane.xlu0 %433
    %v435 = vadd.f32 %v434, %v373
    %v436 = vadd.f32 %v435, %v393
    %438 = vrot.lane.b32.xlu0 %v398, 4
    %v439 = vpop.permute.xlu0 %438
    %v441 = vmul.f32 %v364, %v439
    %443 = vrot.lane.b32.xlu0 %v441, 124
    %v444 = vpop.permute.xlu0 %443
    %v446 = vsel %vm387, %v444, 0.0
    %447 = vadd.xlane.f32.xlu0 %v446
    %v448 = vpop.xlane.xlu0 %447
    %v449 = vadd.f32 %v448, %v381
    %v450 = vadd.f32 %v449, %v405
    %v451 = vmax.f32 %v450, 0.0
    %v452 = vand.u32 2147483647, %v450
    %v453 = vsub.f32 0.0, %v452
    %v454 = vmul.f32 %v453, 1.442695
    %v455 = vpow.pop %v454
    %v456 = vadd.f32 %v455, 1.0
    %v457 = vlog2.pop %v456
    %v458 = vmul.f32 %v457, 0.6931472
    %v459 = vmul.f32 -0.5, %v455
    %v460 = vadd.f32 %v459, 1.0
    %v461 = vmul.f32 %v460, %v455
    %v462 = vand.u32 2147483647, %v455
    %vm463 = vcmp.lt.f32.partialorder %v462, 0.0004427343
    %v464 = vsel %vm463, %v461, %v458
    %v465 = vadd.f32 %v451, %v464
    %v466 = vmax.f32 %v465, 1e-06
    %467 = vrot.lane.b32.xlu0 %v385, 8
    %v468 = vpop.permute.xlu0 %467
    %v470 = vmul.f32 %v364, %v468
    %472 = vrot.lane.b32.xlu0 %v470, 120
    %v473 = vpop.permute.xlu0 %472
    %v475 = vsel %vm387, %v473, 0.0
    %476 = vadd.xlane.f32.xlu0 %v475
    %v477 = vpop.xlane.xlu0 %476
    %v478 = vadd.f32 %v477, %v373
    %v479 = vadd.f32 %v478, %v393
    %480 = vrot.lane.b32.xlu0 %v398, 8
    %v481 = vpop.permute.xlu0 %480
    %v483 = vmul.f32 %v364, %v481
    %485 = vrot.lane.b32.xlu0 %v483, 120
    %v486 = vpop.permute.xlu0 %485
    %v488 = vsel %vm387, %v486, 0.0
    %489 = vadd.xlane.f32.xlu0 %v488
    %v490 = vpop.xlane.xlu0 %489
    %v491 = vadd.f32 %v490, %v381
    %v492 = vadd.f32 %v491, %v405
    %v493 = vmax.f32 %v492, 0.0
    %v494 = vand.u32 2147483647, %v492
    %v495 = vsub.f32 0.0, %v494
    %v496 = vmul.f32 %v495, 1.442695
    %v497 = vpow.pop %v496
    %v498 = vadd.f32 %v497, 1.0
    %v499 = vlog2.pop %v498
    %v500 = vmul.f32 %v499, 0.6931472
    %v501 = vmul.f32 -0.5, %v497
    %v502 = vadd.f32 %v501, 1.0
    %v503 = vmul.f32 %v502, %v497
    %v504 = vand.u32 2147483647, %v497
    %vm505 = vcmp.lt.f32.partialorder %v504, 0.0004427343
    %v506 = vsel %vm505, %v503, %v500
    %v507 = vadd.f32 %v493, %v506
    %v508 = vmax.f32 %v507, 1e-06
    %509 = vrot.lane.b32.xlu0 %v385, 12
    %v510 = vpop.permute.xlu0 %509
    %v512 = vmul.f32 %v364, %v510
    %514 = vrot.lane.b32.xlu0 %v512, 116
    %v515 = vpop.permute.xlu0 %514
    %v517 = vsel %vm387, %v515, 0.0
    %518 = vadd.xlane.f32.xlu0 %v517
    %v519 = vpop.xlane.xlu0 %518
    %v520 = vadd.f32 %v519, %v373
    %v521 = vadd.f32 %v520, %v393
    %522 = vrot.lane.b32.xlu0 %v398, 12
    %v523 = vpop.permute.xlu0 %522
    %v525 = vmul.f32 %v364, %v523
    %527 = vrot.lane.b32.xlu0 %v525, 116
    %v528 = vpop.permute.xlu0 %527
    %v530 = vsel %vm387, %v528, 0.0
    %531 = vadd.xlane.f32.xlu0 %v530
    %v532 = vpop.xlane.xlu0 %531
    %v533 = vadd.f32 %v532, %v381
    %v534 = vadd.f32 %v533, %v405
    %v535 = vmax.f32 %v534, 0.0
    %v536 = vand.u32 2147483647, %v534
    %v537 = vsub.f32 0.0, %v536
    %v538 = vmul.f32 %v537, 1.442695
    %v539 = vpow.pop %v538
    %v540 = vadd.f32 %v539, 1.0
    %v541 = vlog2.pop %v540
    %v542 = vmul.f32 %v541, 0.6931472
    %v543 = vmul.f32 -0.5, %v539
    %v544 = vadd.f32 %v543, 1.0
    %v545 = vmul.f32 %v544, %v539
    %v546 = vand.u32 2147483647, %v539
    %vm547 = vcmp.lt.f32.partialorder %v546, 0.0004427343
    %v548 = vsel %vm547, %v545, %v542
    %v549 = vadd.f32 %v535, %v548
    %v550 = vmax.f32 %v549, 1e-06
    %vm551 = vcmask 7168
    %v552 = vsel %vm551, %v394, %v436
    %vm553 = vcmask 15360
    %v554 = vsel %vm553, %v552, %v479
    %vm555 = vcmask 23552
    %v556 = vsel %vm555, %v554, %v521
    %vm557 = vcmask 31744
    %v558 = vsel %vm557, %v556, %v422
    %vm559 = vcmask 39936
    %v560 = vsel %vm559, %v558, %v466
    %vm561 = vcmask 48128
    %v562 = vsel %vm561, %v560, %v508
    %vm563 = vcmask 56320
    %v564 = vsel %vm563, %v562, %v550
    %vm565 = vcmask 58368
    %566 = vst.msk [vmem:[#allocation9] sm:$0x3] %vm565, %v564
    // Predicated region
    $region50: #{tpu_custom_call.1} parent=1 // pred_check
      _
    $region51: #{tpu_custom_call.1} parent=1 // pred_check_branch
      %568 = sbr.rel (0) target = $region53
    $region52: #{tpu_custom_call.1} parent=1 // pred_region
      %s570 = ssub.s32 32, 32
      %571 = vsyncadd [#allocation4], %s570
      %s573 = sshll.u32 [#allocation9], 4
      %s574 = int_to_ptr.vmem [resolvable:$true] %s573
      %576 = dma.vmem_to_hbm [thread:$0]  %s574, 32, %s9, [#allocation4]
    $region53: #{tpu_custom_call.1} parent=1 // pred_fallthru
      _
    // Predicated region
    $region54: #{tpu_custom_call.1} parent=1 // pred_check
      _
    $region55: #{tpu_custom_call.1} parent=1 // pred_check_branch
      %578 = sbr.rel (0) target = $region57
    $region56: #{tpu_custom_call.1} parent=1 // pred_region
      %579 = dma.done [#allocation4], 32
    $region57: #{tpu_custom_call.1} parent=1 // pred_fallthru
      _
    %580 = vsyncpa [#allocation3], 1
    %581 = vsyncpa [#allocation7], 1
    %582 = vsyncpa [#allocation4], 1
    %583 = vsyncpa [#allocation5], 1

</llo_original>
